<compile_context>
chip_gen: v7x
topology: tpu7x:2x2x1
jax: 0.10.0
libtpu: 0.0.40
codegen_flags: <defaults>
</compile_context>

<pallas_src>
import math

import jax
import jax.numpy as jnp
from jax.experimental import pallas as pl
from jax.experimental.pallas import tpu as pltpu

_MiB = 1024 * 1024


def _channel_att_kernel(im_ref, w1f_ref, shift_ref, w2_ref, b2_ref,
                        cv_ref, out_ref):
    # im_ref    : (C_im, THW)             current (batch, hw-tile) image-feature slab
    # w1f_ref   : (C_mid, C_im)           conv1 weight with BN scale folded in
    # shift_ref : (C_mid, 1)              folded BN shift
    # w2_ref    : (C_cv, C_mid)           conv2 weight
    # b2_ref    : (C_cv, 1)               conv2 bias
    # cv_ref    : (C_cv, d_tile, THW)     cost-volume slab (native order, HW on lanes)
    # out_ref   : (C_cv, d_tile, THW)
    x = im_ref[...]                                                    # (C_im, THW)

    # BasicConv: 1x1 conv (BN scale pre-folded) -> +shift -> LeakyReLU(0.01)
    h = jnp.dot(w1f_ref[...], x, preferred_element_type=jnp.float32)   # (C_mid, THW)
    h = h + shift_ref[...]
    h = jnp.where(h > 0, h, jnp.float32(0.01) * h)

    # Second 1x1 conv (+bias), sigmoid gate
    att = jnp.dot(w2_ref[...], h, preferred_element_type=jnp.float32)  # (C_cv, THW)
    att = att + b2_ref[...]
    gate = jax.nn.sigmoid(att)                                         # (C_cv, THW)

    # Gate the cost volume with a single broadcast multiply over the D-tile
    # (sublane broadcast); one vectorized, lane-dense, unmasked store stream.
    out_ref[...] = (gate[:, None, :] * cv_ref[...]).astype(out_ref.dtype)


def _round_up(x, m):
    return -(-x // m) * m


def _choose_tiles(c_cv, d, hw, itemsize, budget_bytes):
    """Pick (d_tile, hw_tile) so one cv tile (C_cv, d_tile, hw_tile) stays within
    budget, preferring hw_tile >= 512 columns for long strided-DMA bursts."""
    hw_cap = _round_up(hw, 128)

    # 1) Full D with the largest hw tile that fits.
    cols = budget_bytes // max(c_cv * d * itemsize, 1)
    cols = (cols // 128) * 128
    hw_full_d = min(cols, hw_cap)
    if hw_full_d >= min(512, hw_cap):
        return d, max(hw_full_d, 128)

    # 2) Tile D, keep hw_tile >= 512 (or the whole HW if smaller).
    for hw_tile in (min(512, hw_cap), min(256, hw_cap), min(128, hw_cap)):
        d_tile = (budget_bytes // max(c_cv * hw_tile * itemsize, 1)) // 8 * 8
        d_tile = min(d_tile, d)
        if d_tile >= min(8, d):
            return max(d_tile, min(8, d)), hw_tile

    # 3) Fallback: minimal tiles (very large C_cv).
    return min(8, d), min(128, hw_cap)


def channel_att_pallas(cv, im, w1, bn_gamma, bn_beta, bn_mean, bn_var, w2, b2,
                       eps=1e-5, hw_tile=None, d_tile=None,
                       cv_tile_budget_bytes=None, vmem_limit_bytes=None):
    """cv: (B, C_cv, D, H, W) f32, im: (B, C_im, H, W) f32   (PyTorch layout).
    w1: (C_mid, C_im)  (Conv2d 1x1 weight squeezed), w2: (C_cv, C_mid), b2: (C_cv,)."""
    B, C_cv, D, H, W = cv.shape
    _, C_im, _, _ = im.shape
    C_mid = w1.shape[0]
    HW = H * W
    itemsize = cv.dtype.itemsize

    # --- generation-aware VMEM budgeting --------------------------------------
    # Footprint ~= 2x(in cv tile) + 2x(out cv tile) + 2x(im tile) + weights.
    if vmem_limit_bytes is None or cv_tile_budget_bytes is None:
        phys_vmem = 64 * _MiB  # v7x-safe default if the query fails
        try:
            phys_vmem = pltpu.get_tpu_info().vmem_capacity_bytes
        except Exception:
            pass
        if phys_vmem <= 64 * _MiB:            # v7x: 64 MiB physical
            auto_limit, auto_budget = 48 * _MiB, 6 * _MiB
        else:                                  # v5e / v6e: 128 MiB physical
            auto_limit, auto_budget = 96 * _MiB, 12 * _MiB
        if vmem_limit_bytes is None:
            vmem_limit_bytes = auto_limit
        if cv_tile_budget_bytes is None:
            cv_tile_budget_bytes = auto_budget

    # --- free reshapes only (HW is the contiguous minor dims); no transposes ---
    im_flat = im.reshape(B, C_im, HW)                       # (B, C_im, HW)
    cv_flat = cv.reshape(B, C_cv, D, HW)                    # (B, C_cv, D, HW)

    # --- fold eval-mode BatchNorm into conv1: scale -> weights, shift -> add ---
    inv_std = 1.0 / jnp.sqrt(bn_var + eps)
    scale = bn_gamma * inv_std                              # (C_mid,)
    w1f = w1 * scale[:, None]                               # (C_mid, C_im)
    shift = (bn_beta - bn_mean * scale).reshape(C_mid, 1)   # (C_mid, 1)
    b2_r = b2.reshape(C_cv, 1)                              # (C_cv, 1)

    # --- tile selection (lane-dense hw tiles, optional D tiling) ---------------
    auto_d, auto_hw = _choose_tiles(C_cv, D, HW, itemsize, cv_tile_budget_bytes)
    if d_tile is None:
        d_tile = auto_d
    if hw_tile is None:
        hw_tile = auto_hw
    d_tile = min(d_tile, D)
    n_hw = -(-HW // hw_tile)    # cdiv: ragged last block handled by masking
    n_d = -(-D // d_tile)

    grid_spec = pltpu.PrefetchScalarGridSpec(
        num_scalar_prefetch=0,
        # d varies fastest so the im tile (and its DMA) is reused across the
        # n_d steps of one hw tile.
        grid=(B, n_hw, n_d),
        in_specs=[
            pl.BlockSpec((None, C_im, hw_tile), lambda b, t, d: (b, 0, t)),
            pl.BlockSpec((C_mid, C_im), lambda b, t, d: (0, 0)),
            pl.BlockSpec((C_mid, 1), lambda b, t, d: (0, 0)),
            pl.BlockSpec((C_cv, C_mid), lambda b, t, d: (0, 0)),
            pl.BlockSpec((C_cv, 1), lambda b, t, d: (0, 0)),
            pl.BlockSpec((None, C_cv, d_tile, hw_tile),
                         lambda b, t, d: (b, 0, d, t)),
        ],
        out_specs=pl.BlockSpec((None, C_cv, d_tile, hw_tile),
                               lambda b, t, d: (b, 0, d, t)),
    )

    out_flat = pl.pallas_call(
        _channel_att_kernel,
        out_shape=jax.ShapeDtypeStruct((B, C_cv, D, HW), cv.dtype),
        grid_spec=grid_spec,
        compiler_params=pltpu.CompilerParams(
            dimension_semantics=("parallel", "parallel", "parallel"),
            vmem_limit_bytes=vmem_limit_bytes),
    )(im_flat, w1f, shift, w2, b2_r, cv_flat)

    # free reshape back to (B, C_cv, D, H, W)
    return out_flat.reshape(B, C_cv, D, H, W)


def _reference(cv, im, w1, bn_gamma, bn_beta, bn_mean, bn_var, w2, b2, eps=1e-5):
    # pure-JAX reference of the PyTorch forward (NCHW / NCDHW)
    h = jnp.einsum('bchw,oc->bohw', im, w1)
    inv_std = 1.0 / jnp.sqrt(bn_var + eps)
    h = (h - bn_mean[None, :, None, None]) * (bn_gamma * inv_std)[None, :, None, None] \
        + bn_beta[None, :, None, None]
    h = jnp.where(h > 0, h, 0.01 * h)
    att = jnp.einsum('bchw,oc->bohw', h, w2) + b2[None, :, None, None]
    att = jax.nn.sigmoid(att)[:, :, None, :, :]     # unsqueeze(2)
    return att * cv


if __name__ == "__main__":
    B, C_im, C_cv, D, H, W = 2, 8, 8, 16, 16, 16
    C_mid = C_im // 2

    key = jax.random.PRNGKey(0)
    k_im, k_cv, k_w1, k_w2, k_b2 = jax.random.split(key, 5)

    im = jax.random.normal(k_im, (B, C_im, H, W), dtype=jnp.float32)
    cv = jax.random.normal(k_cv, (B, C_cv, D, H, W), dtype=jnp.float32)

    # weight_init(): Conv2d weights ~ N(0, sqrt(2 / (k*k*out_channels)))
    w1 = jax.random.normal(k_w1, (C_mid, C_im), dtype=jnp.float32) * math.sqrt(2.0 / C_mid)
    w2 = jax.random.normal(k_w2, (C_cv, C_mid), dtype=jnp.float32) * math.sqrt(2.0 / C_cv)
    # Conv2d bias: PyTorch default uniform(-1/sqrt(fan_in), 1/sqrt(fan_in))
    b2 = jax.random.uniform(k_b2, (C_cv,), dtype=jnp.float32,
                            minval=-1.0 / math.sqrt(C_mid),
                            maxval=1.0 / math.sqrt(C_mid))
    # BatchNorm2d after weight_init(): gamma=1, beta=0; running stats: mean=0, var=1
    bn_gamma = jnp.ones((C_mid,), jnp.float32)
    bn_beta = jnp.zeros((C_mid,), jnp.float32)
    bn_mean = jnp.zeros((C_mid,), jnp.float32)
    bn_var = jnp.ones((C_mid,), jnp.float32)

    ref = _reference(cv, im, w1, bn_gamma, bn_beta, bn_mean, bn_var, w2, b2)

    # 1) Auto tiling (whole HW / D fit in one tile at this small size).
    out_auto = channel_att_pallas(cv, im, w1, bn_gamma, bn_beta, bn_mean, bn_var,
                                  w2, b2)
    out_auto = jax.block_until_ready(out_auto)
    assert out_auto.shape == (B, C_cv, D, H, W)
    assert jnp.allclose(out_auto, ref, atol=1e-5, rtol=1e-5), "auto-tile mismatch"

    # 2) Forced hw + D tiling: grid (B, HW/128, D/8) = (2, 2, 2) exercises the
    #    multi-tile path (lane-dense hw tiles, D-tiled cv slabs, gate reuse).
    out_tiled = channel_att_pallas(cv, im, w1, bn_gamma, bn_beta, bn_mean, bn_var,
                                   w2, b2, hw_tile=128, d_tile=8)
    out_tiled = jax.block_until_ready(out_tiled)
    assert jnp.allclose(out_tiled, ref, atol=1e-5, rtol=1e-5), "tiled mismatch"

    print("KERNEL_OK")
</pallas_src>

<mosaic_0001>
module attributes {stable_mosaic.version = 11 : i64} {
  func.func @_channel_att_kernel(%arg0: i32, %arg1: i32, %arg2: i32, %arg3: memref<1x8x256xf32, #tpu.memory_space<vmem>>, %arg4: memref<4x8xf32, #tpu.memory_space<vmem>>, %arg5: memref<4x1xf32, #tpu.memory_space<vmem>>, %arg6: memref<8x4xf32, #tpu.memory_space<vmem>>, %arg7: memref<8x1xf32, #tpu.memory_space<vmem>>, %arg8: memref<1x8x16x256xf32, #tpu.memory_space<vmem>>, %arg9: memref<1x8x16x256xf32, #tpu.memory_space<vmem>>) attributes {dimension_semantics = [#tpu.dimension_semantics<parallel>, #tpu.dimension_semantics<parallel>, #tpu.dimension_semantics<parallel>], iteration_bounds = array<i64: 2, 1, 1>, scalar_prefetch = 0 : i64, scratch_operands = 0 : i64, tpu.core_type = #tpu.core_type<tc>, window_params = [{transform_indices = @transform_0, window_bounds = array<i64: 1, 8, 256>}, {pipeline_mode = #tpu.pipeline_mode<synchronous>, transform_indices = @transform_1, window_bounds = array<i64: 4, 8>}, {pipeline_mode = #tpu.pipeline_mode<synchronous>, transform_indices = @transform_2, window_bounds = array<i64: 4, 1>}, {pipeline_mode = #tpu.pipeline_mode<synchronous>, transform_indices = @transform_3, window_bounds = array<i64: 8, 4>}, {pipeline_mode = #tpu.pipeline_mode<synchronous>, transform_indices = @transform_4, window_bounds = array<i64: 8, 1>}, {transform_indices = @transform_5, window_bounds = array<i64: 1, 8, 16, 256>}, {transform_indices = @transform_6, window_bounds = array<i64: 1, 8, 16, 256>}]} {
    %c0 = arith.constant 0 : index
    %c0_0 = arith.constant 0 : index
    %c0_1 = arith.constant 0 : index
    %0 = vector.load %arg3[%c0, %c0_0, %c0_1] : memref<1x8x256xf32, #tpu.memory_space<vmem>>, vector<1x8x256xf32>
    %1 = vector.shape_cast %0 : vector<1x8x256xf32> to vector<8x256xf32>
    %c0_2 = arith.constant 0 : index
    %c0_3 = arith.constant 0 : index
    %2 = vector.load %arg4[%c0_2, %c0_3] : memref<4x8xf32, #tpu.memory_space<vmem>>, vector<4x8xf32>
    %cst = arith.constant dense<0.000000e+00> : vector<4x256xf32>
    %3 = tpu.matmul %2, %1, %cst {dimension_numbers = #tpu.dot_dimension_numbers<[1], [0], [0], [1], [0, 0, 1, 1], [], []>} : vector<4x8xf32>, vector<8x256xf32>, vector<4x256xf32> -> vector<4x256xf32>
    %c0_4 = arith.constant 0 : index
    %c0_5 = arith.constant 0 : index
    %4 = vector.load %arg5[%c0_4, %c0_5] : memref<4x1xf32, #tpu.memory_space<vmem>>, vector<4x1xf32>
    %5 = vector.broadcast %4 : vector<4x1xf32> to vector<4x256xf32>
    %6 = arith.addf %3, %5 : vector<4x256xf32>
    %cst_6 = arith.constant 0.000000e+00 : f32
    %7 = vector.broadcast %cst_6 : f32 to vector<4x256xf32>
    %8 = arith.cmpf ogt, %6, %7 : vector<4x256xf32>
    %cst_7 = arith.constant 0.00999999977 : f32
    %9 = vector.broadcast %cst_7 : f32 to vector<4x256xf32>
    %10 = arith.mulf %9, %6 : vector<4x256xf32>
    %11 = arith.select %8, %6, %10 : vector<4x256xi1>, vector<4x256xf32>
    %c0_8 = arith.constant 0 : index
    %c0_9 = arith.constant 0 : index
    %12 = vector.load %arg6[%c0_8, %c0_9] : memref<8x4xf32, #tpu.memory_space<vmem>>, vector<8x4xf32>
    %cst_10 = arith.constant dense<0.000000e+00> : vector<8x256xf32>
    %13 = tpu.matmul %12, %11, %cst_10 {dimension_numbers = #tpu.dot_dimension_numbers<[1], [0], [0], [1], [0, 0, 1, 1], [], []>} : vector<8x4xf32>, vector<4x256xf32>, vector<8x256xf32> -> vector<8x256xf32>
    %c0_11 = arith.constant 0 : index
    %c0_12 = arith.constant 0 : index
    %14 = vector.load %arg7[%c0_11, %c0_12] : memref<8x1xf32, #tpu.memory_space<vmem>>, vector<8x1xf32>
    %15 = vector.broadcast %14 : vector<8x1xf32> to vector<8x256xf32>
    %16 = arith.addf %13, %15 : vector<8x256xf32>
    %17 = arith.negf %16 : vector<8x256xf32>
    %18 = math.exp %17 : vector<8x256xf32>
    %cst_13 = arith.constant 1.000000e+00 : f32
    %19 = vector.broadcast %cst_13 : f32 to vector<8x256xf32>
    %20 = arith.addf %19, %18 : vector<8x256xf32>
    %21 = arith.divf %19, %20 : vector<8x256xf32>
    %22 = vector.shape_cast %21 : vector<8x256xf32> to vector<8x1x256xf32>
    %c0_14 = arith.constant 0 : index
    %c0_15 = arith.constant 0 : index
    %c0_16 = arith.constant 0 : index
    %c0_17 = arith.constant 0 : index
    %23 = vector.load %arg8[%c0_14, %c0_15, %c0_16, %c0_17] : memref<1x8x16x256xf32, #tpu.memory_space<vmem>>, vector<1x8x16x256xf32>
    %24 = vector.shape_cast %23 : vector<1x8x16x256xf32> to vector<8x16x256xf32>
    %25 = vector.broadcast %22 : vector<8x1x256xf32> to vector<8x16x256xf32>
    %26 = arith.mulf %25, %24 : vector<8x16x256xf32>
    %c0_18 = arith.constant 0 : index
    %c0_19 = arith.constant 0 : index
    %c0_20 = arith.constant 0 : index
    %c0_21 = arith.constant 0 : index
    %27 = vector.load %arg9[%c0_18, %c0_19, %c0_20, %c0_21] : memref<1x8x16x256xf32, #tpu.memory_space<vmem>>, vector<1x8x16x256xf32>
    %28 = vector.shape_cast %27 : vector<1x8x16x256xf32> to vector<8x16x256xf32>
    %29 = vector.shape_cast %26 : vector<8x16x256xf32> to vector<1x8x16x256xf32>
    tpu.vector_store %arg9[%c0_18, %c0_19, %c0_20, %c0_21], %29 {strides = array<i32>} : memref<1x8x16x256xf32, #tpu.memory_space<vmem>>, vector<1x8x16x256xf32>,
    return
  }
  func.func @transform_0(%arg0: i32, %arg1: i32, %arg2: i32) -> (i32, i32, i32) {
    %c0_i32 = arith.constant 0 : i32
    %c0_i32_0 = arith.constant 0 : i32
    return %arg0, %c0_i32, %arg1 : i32, i32, i32
  }
  func.func @transform_1(%arg0: i32, %arg1: i32, %arg2: i32) -> (i32, i32) {
    %c0_i32 = arith.constant 0 : i32
    %c0_i32_0 = arith.constant 0 : i32
    %c0_i32_1 = arith.constant 0 : i32
    return %c0_i32, %c0_i32_0 : i32, i32
  }
  func.func @transform_2(%arg0: i32, %arg1: i32, %arg2: i32) -> (i32, i32) {
    %c0_i32 = arith.constant 0 : i32
    %c0_i32_0 = arith.constant 0 : i32
    %c0_i32_1 = arith.constant 0 : i32
    return %c0_i32, %c0_i32_0 : i32, i32
  }
  func.func @transform_3(%arg0: i32, %arg1: i32, %arg2: i32) -> (i32, i32) {
    %c0_i32 = arith.constant 0 : i32
    %c0_i32_0 = arith.constant 0 : i32
    %c0_i32_1 = arith.constant 0 : i32
    return %c0_i32, %c0_i32_0 : i32, i32
  }
  func.func @transform_4(%arg0: i32, %arg1: i32, %arg2: i32) -> (i32, i32) {
    %c0_i32 = arith.constant 0 : i32
    %c0_i32_0 = arith.constant 0 : i32
    %c0_i32_1 = arith.constant 0 : i32
    return %c0_i32, %c0_i32_0 : i32, i32
  }
  func.func @transform_5(%arg0: i32, %arg1: i32, %arg2: i32) -> (i32, i32, i32, i32) {
    %c0_i32 = arith.constant 0 : i32
    %c0_i32_0 = arith.constant 0 : i32
    return %arg0, %c0_i32, %arg2, %arg1 : i32, i32, i32, i32
  }
  func.func @transform_6(%arg0: i32, %arg1: i32, %arg2: i32) -> (i32, i32, i32, i32) {
    %c0_i32 = arith.constant 0 : i32
    %c0_i32_0 = arith.constant 0 : i32
    return %arg0, %c0_i32, %arg2, %arg1 : i32, i32, i32, i32
  }
}

</mosaic_0001>

<llo_original>
// kernel: tpu_custom_call.1
$region0: #{tpu_custom_call.1}
  #allocation0 [shape = 'u32[]', space=smem, size = 0x4, offset = 0x4, fixed_abs, tag = 'smem constant byte address 0x4 - core index']
  #allocation1 [shape = 'u32[144,128]{1,0:T(1,128)}', space=vmem, size = 0x12000, scoped, tag = 'internal scratch']
  %s0 = inlined_call_operand.hbm [shape: f32[2,8,256], index: 0, kind: input, shape index: {}]
  %s1 = inlined_call_operand.vmem [shape: f32[4,8], index: 1, kind: input, shape index: {}]
  %s2 = inlined_call_operand.vmem [shape: f32[4,1], index: 2, kind: input, shape index: {}]
  %s3 = inlined_call_operand.vmem [shape: f32[8,4], index: 3, kind: input, shape index: {}]
  %s4 = inlined_call_operand.vmem [shape: f32[8,1], index: 4, kind: input, shape index: {}]
  %s5 = inlined_call_operand.hbm [shape: f32[2,8,16,256], index: 5, kind: input, shape index: {}]
  %s6 = inlined_call_operand.hbm [shape: f32[2,8,16,256], index: 6, kind: output, shape index: {}]
  %s7 = sld [smem:[#allocation0]]
  $region65: #{tpu_custom_call.1} parent=0
    _
  %s9 = ssub.s32 1, %s7
  %s10 = scalar_select 0, %s9, %s7
  $region1: #{tpu_custom_call.1} parent=0
    #allocation2 [shape = 'u8[16384]{0}', space=vmem, size = 0x4000, scoped, tag = 'input window, operand 0']
    #allocation3 [shape = 's32[2]{0}', space=sflag, size = 0x8, scoped, tag = 'scoped memory for tpu_custom_call.1']
    #allocation4 [shape = 's32[2]{0}', space=sflag, size = 0x8, scoped, tag = 'scoped memory for tpu_custom_call.1']
    #allocation5 [shape = 'u8[262144]{0}', space=vmem, size = 0x40000, scoped, tag = 'input window, operand 5']
    #allocation6 [shape = 's32[2]{0}', space=sflag, size = 0x8, scoped, tag = 'scoped memory for tpu_custom_call.1']
    #allocation7 [shape = 'u8[262144]{0}', space=vmem, size = 0x40000, scoped, tag = 'output window, operand 0']
    %11 = vsyncpa [#allocation3], 0
    %s12 = scalar_lea.sflag [#allocation3], 1
    %13 = vsyncpa %s12, 0
    %14 = vsyncpa [#allocation6], 0
    %s15 = scalar_lea.sflag [#allocation6], 1
    %16 = vsyncpa %s15, 0
    %17 = vsyncpa [#allocation4], 0
    %s18 = scalar_lea.sflag [#allocation4], 1
    %19 = vsyncpa %s18, 0
    loop: start=0, step=1, limit=4
    $region2: #{tpu_custom_call.1} parent=1 // loop_pre_header
      _
    $region3: #{tpu_custom_call.1} parent=1 // loop_header
      %s21 = sphi 0, %s25
      %p22 = scmp.ge.s32.totalorder %s21, 4
      %s28 = sphi 0, %s47
      %s29 = sphi 0, %s43
      %s30 = sphi 0, %s39
      %s31 = sphi 0, %s28
      %s32 = sphi 0, %s29
      %s33 = sphi 0, %s30
      %s34 = sphi 0, %s31
      %s35 = sphi 0, %s32
      %s36 = sphi 0, %s33
      %s52 = sphi 0, %s54
      %s55 = sphi 0, %s52
      %s56 = sphi 0, %s55
      %s72 = sphi 0, %s56
      %s76 = sphi 0, %s76
      %s78 = sphi 0, %s76
      %s79 = sphi 0, %s78
      %s93 = sphi 0, %s79
      %s97 = sphi 0, %s97
      %s99 = sphi 0, %s97
      %s100 = sphi 0, %s99
      %s114 = sphi 0, %s100
      %s118 = sphi 0, %s118
      %s120 = sphi 0, %s118
      %s121 = sphi 0, %s120
      %s135 = sphi 0, %s121
      %s139 = sphi 0, %s139
      %s141 = sphi 0, %s139
      %s142 = sphi 0, %s141
      %s156 = sphi 0, %s142
      %s166 = sphi 0, %s168
      %s169 = sphi 0, %s166
      %s170 = sphi 0, %s169
      %s186 = sphi 0, %s170
      %s196 = sphi 0, %s198
      %s199 = sphi 0, %s196
      %s200 = sphi 0, %s199
      %s216 = sphi 0, %s200
    $region4: #{tpu_custom_call.1} parent=1 // loop_header_branch
      %24 = sbr.rel (%p22) target = $region8
    $region5: #{tpu_custom_call.1} parent=1 // loop_body
      %s26 = ssub.s32 %s21, 1
      %s27 = ssub.s32 %s21, 2
      %s37 = sadd.s32 1, %s30
      %p38 = scmp.ge.s32.totalorder %s37, 1
      %s39 = scalar_select %p38, 0, %s37
      %s40 = sadd.s32 1, %s29
      %s41 = scalar_select %p38, %s40, %s29
      %p42 = scmp.ge.s32.totalorder %s41, 1
      %s43 = scalar_select %p42, 0, %s41
      %s44 = sadd.s32 1, %s28
      %s45 = scalar_select %p42, %s44, %s28
      %p46 = scmp.ge.s32.totalorder %s45, 2
      %s47 = scalar_select %p46, 0, %s45
      %s48 = ssub.s32 %s28, %s47
      %s49 = ssub.s32 %s29, %s43
      %s50 = sor.u32 %s48, %s49
      %p51 = scmp.eq.s32.totalorder %s50, 0
      %s53 = sadd.s32 %s52, 1
      %s54 = scalar_select %p51, %s52, %s53
      %p57 = pneg %p51
      %p58 = scmp.eq.s32.totalorder %s21, 1
      %p59 = por %p57, %p58
      %p60 = scmp.ne.s32.totalorder %s52, %s55
      %p61 = scmp.eq.s32.totalorder %s21, 0
      %p62 = por %p60, %p61
      %p63 = scmp.ne.s32.totalorder %s52, %s55
      %p64 = scmp.eq.s32.totalorder %s26, 1
      %p65 = por %p63, %p64
      %p66 = scmp.ne.s32.totalorder %s55, %s56
      %p67 = scmp.eq.s32.totalorder %s26, 0
      %p68 = por %p66, %p67
      %p69 = scmp.ne.s32.totalorder %s55, %s56
      %p70 = scmp.eq.s32.totalorder %s27, 1
      %p71 = por %p69, %p70
      %p73 = scmp.ne.s32.totalorder %s56, %s72
      %p74 = scmp.eq.s32.totalorder %s27, 0
      %p75 = por %p73, %p74
      %s77 = sadd.s32 %s76, 1
      %p80 = scmp.eq.s32.totalorder %s21, 1
      %p81 = scmp.ne.s32.totalorder %s76, %s78
      %p82 = scmp.eq.s32.totalorder %s21, 0
      %p83 = por %p81, %p82
      %p84 = scmp.ne.s32.totalorder %s76, %s78
      %p85 = scmp.eq.s32.totalorder %s26, 1
      %p86 = por %p84, %p85
      %p87 = scmp.ne.s32.totalorder %s78, %s79
      %p88 = scmp.eq.s32.totalorder %s26, 0
      %p89 = por %p87, %p88
      %p90 = scmp.ne.s32.totalorder %s78, %s79
      %p91 = scmp.eq.s32.totalorder %s27, 1
      %p92 = por %p90, %p91
      %p94 = scmp.ne.s32.totalorder %s79, %s93
      %p95 = scmp.eq.s32.totalorder %s27, 0
      %p96 = por %p94, %p95
      %s98 = sadd.s32 %s97, 1
      %p101 = scmp.eq.s32.totalorder %s21, 1
      %p102 = scmp.ne.s32.totalorder %s97, %s99
      %p103 = scmp.eq.s32.totalorder %s21, 0
      %p104 = por %p102, %p103
      %p105 = scmp.ne.s32.totalorder %s97, %s99
      %p106 = scmp.eq.s32.totalorder %s26, 1
      %p107 = por %p105, %p106
      %p108 = scmp.ne.s32.totalorder %s99, %s100
      %p109 = scmp.eq.s32.totalorder %s26, 0
      %p110 = por %p108, %p109
      %p111 = scmp.ne.s32.totalorder %s99, %s100
      %p112 = scmp.eq.s32.totalorder %s27, 1
      %p113 = por %p111, %p112
      %p115 = scmp.ne.s32.totalorder %s100, %s114
      %p116 = scmp.eq.s32.totalorder %s27, 0
      %p117 = por %p115, %p116
      %s119 = sadd.s32 %s118, 1
      %p122 = scmp.eq.s32.totalorder %s21, 1
      %p123 = scmp.ne.s32.totalorder %s118, %s120
      %p124 = scmp.eq.s32.totalorder %s21, 0
      %p125 = por %p123, %p124
      %p126 = scmp.ne.s32.totalorder %s118, %s120
      %p127 = scmp.eq.s32.totalorder %s26, 1
      %p128 = por %p126, %p127
      %p129 = scmp.ne.s32.totalorder %s120, %s121
      %p130 = scmp.eq.s32.totalorder %s26, 0
      %p131 = por %p129, %p130
      %p132 = scmp.ne.s32.totalorder %s120, %s121
      %p133 = scmp.eq.s32.totalorder %s27, 1
      %p134 = por %p132, %p133
      %p136 = scmp.ne.s32.totalorder %s121, %s135
      %p137 = scmp.eq.s32.totalorder %s27, 0
      %p138 = por %p136, %p137
      %s140 = sadd.s32 %s139, 1
      %p143 = scmp.eq.s32.totalorder %s21, 1
      %p144 = scmp.ne.s32.totalorder %s139, %s141
      %p145 = scmp.eq.s32.totalorder %s21, 0
      %p146 = por %p144, %p145
      %p147 = scmp.ne.s32.totalorder %s139, %s141
      %p148 = scmp.eq.s32.totalorder %s26, 1
      %p149 = por %p147, %p148
      %p150 = scmp.ne.s32.totalorder %s141, %s142
      %p151 = scmp.eq.s32.totalorder %s26, 0
      %p152 = por %p150, %p151
      %p153 = scmp.ne.s32.totalorder %s141, %s142
      %p154 = scmp.eq.s32.totalorder %s27, 1
      %p155 = por %p153, %p154
      %p157 = scmp.ne.s32.totalorder %s142, %s156
      %p158 = scmp.eq.s32.totalorder %s27, 0
      %p159 = por %p157, %p158
      %s160 = ssub.s32 %s28, %s47
      %s161 = ssub.s32 %s30, %s39
      %s162 = sor.u32 %s160, %s161
      %s163 = ssub.s32 %s29, %s43
      %s164 = sor.u32 %s162, %s163
      %p165 = scmp.eq.s32.totalorder %s164, 0
      %s167 = sadd.s32 %s166, 1
      %s168 = scalar_select %p165, %s166, %s167
      %p171 = pneg %p165
      %p172 = scmp.eq.s32.totalorder %s21, 1
      %p173 = por %p171, %p172
      %p174 = scmp.ne.s32.totalorder %s166, %s169
      %p175 = scmp.eq.s32.totalorder %s21, 0
      %p176 = por %p174, %p175
      %p177 = scmp.ne.s32.totalorder %s166, %s169
      %p178 = scmp.eq.s32.totalorder %s26, 1
      %p179 = por %p177, %p178
      %p180 = scmp.ne.s32.totalorder %s169, %s170
      %p181 = scmp.eq.s32.totalorder %s26, 0
      %p182 = por %p180, %p181
      %p183 = scmp.ne.s32.totalorder %s169, %s170
      %p184 = scmp.eq.s32.totalorder %s27, 1
      %p185 = por %p183, %p184
      %p187 = scmp.ne.s32.totalorder %s170, %s186
      %p188 = scmp.eq.s32.totalorder %s27, 0
      %p189 = por %p187, %p188
      %s190 = ssub.s32 %s28, %s47
      %s191 = ssub.s32 %s30, %s39
      %s192 = sor.u32 %s190, %s191
      %s193 = ssub.s32 %s29, %s43
      %s194 = sor.u32 %s192, %s193
      %p195 = scmp.eq.s32.totalorder %s194, 0
      %s197 = sadd.s32 %s196, 1
      %s198 = scalar_select %p195, %s196, %s197
      %p201 = pneg %p195
      %p202 = scmp.eq.s32.totalorder %s21, 1
      %p203 = por %p201, %p202
      %p204 = scmp.ne.s32.totalorder %s196, %s199
      %p205 = scmp.eq.s32.totalorder %s21, 0
      %p206 = por %p204, %p205
      %p207 = scmp.ne.s32.totalorder %s196, %s199
      %p208 = scmp.eq.s32.totalorder %s26, 1
      %p209 = por %p207, %p208
      %p210 = scmp.ne.s32.totalorder %s199, %s200
      %p211 = scmp.eq.s32.totalorder %s26, 0
      %p212 = por %p210, %p211
      %p213 = scmp.ne.s32.totalorder %s199, %s200
      %p214 = scmp.eq.s32.totalorder %s27, 1
      %p215 = por %p213, %p214
      %p217 = scmp.ne.s32.totalorder %s200, %s216
      %p218 = scmp.eq.s32.totalorder %s27, 0
      %p219 = por %p217, %p218
      %p220 = scmp.le.s32.totalorder 1, %s21
      %p221 = scmp.lt.s32.totalorder %s21, 3
      %p222 = pnand %p220, %p221
      %p223 = pneg %p222
      // Predicated region
      $region9: #{tpu_custom_call.1} parent=5 // pred_check
        _
      $region10: #{tpu_custom_call.1} parent=5 // pred_check_branch
        %225 = sbr.rel (%p222) target = $region12
      $region11: #{tpu_custom_call.1} parent=5 // pred_region
        %s226 = ssub.s32 %s21, 1
        // Predicated region
        $region13: #{tpu_custom_call.1} parent=11 // pred_check
          %p227 = pneg %p89
        $region14: #{tpu_custom_call.1} parent=11 // pred_check_branch
          %229 = sbr.rel (%p227) target = $region16
        $region15: #{tpu_custom_call.1} parent=11 // pred_region
          _
        $region16: #{tpu_custom_call.1} parent=11 // pred_fallthru
          _
        // Predicated region
        $region17: #{tpu_custom_call.1} parent=11 // pred_check
          %p230 = pneg %p110
        $region18: #{tpu_custom_call.1} parent=11 // pred_check_branch
          %232 = sbr.rel (%p230) target = $region20
        $region19: #{tpu_custom_call.1} parent=11 // pred_region
          _
        $region20: #{tpu_custom_call.1} parent=11 // pred_fallthru
          _
        // Predicated region
        $region21: #{tpu_custom_call.1} parent=11 // pred_check
          %p233 = pneg %p131
        $region22: #{tpu_custom_call.1} parent=11 // pred_check_branch
          %235 = sbr.rel (%p233) target = $region24
        $region23: #{tpu_custom_call.1} parent=11 // pred_region
          _
        $region24: #{tpu_custom_call.1} parent=11 // pred_fallthru
          _
        // Predicated region
        $region25: #{tpu_custom_call.1} parent=11 // pred_check
          %p236 = pneg %p152
        $region26: #{tpu_custom_call.1} parent=11 // pred_check_branch
          %238 = sbr.rel (%p236) target = $region28
        $region27: #{tpu_custom_call.1} parent=11 // pred_region
          _
        $region28: #{tpu_custom_call.1} parent=11 // pred_fallthru
          _
      $region12: #{tpu_custom_call.1} parent=5 // pred_fallthru
        _
      %p239 = scmp.lt.s32.totalorder %s21, 2
      // Predicated region
      $region29: #{tpu_custom_call.1} parent=5 // pred_check
        %p240 = pneg %p239
      $region30: #{tpu_custom_call.1} parent=5 // pred_check_branch
        %242 = sbr.rel (%p240) target = $region32
      $region31: #{tpu_custom_call.1} parent=5 // pred_region
        // Predicated region
        $region33: #{tpu_custom_call.1} parent=31 // pred_check
          %p243 = pneg %p62
        $region34: #{tpu_custom_call.1} parent=31 // pred_check_branch
          %245 = sbr.rel (%p243) target = $region36
        $region35: #{tpu_custom_call.1} parent=31 // pred_region
          %s246 = sand.u32 %s52, 1
          %s247 = scalar_lea.sflag [#allocation3], %s246
          %s248 = sand.u32 %s52, 1
          %s249 = smul.addr %s248, 16
          %s250 = scalar_lea.vmem [#allocation2], %s249
          %s251 = smul.u32 2, %s29
          %s253 = ssub.s32 256, 256
          %254 = vsyncadd %s247, %s253
          %s255 = smul.addr %s28, 2
          %s256 = sadd.s32 %s251, %s255
          %s257 = smul.addr %s256, 128
          %s258 = scalar_lea.hbm %s0, %s257
          %s260 = sshll.u32 %s250, 4
          %s261 = int_to_ptr.vmem [resolvable:$true] %s260
          %263 = dma.hbm_to_vmem [thread:$0]  %s258, 256, %s261, %s247
        $region36: #{tpu_custom_call.1} parent=31 // pred_fallthru
          _
        // Predicated region
        $region37: #{tpu_custom_call.1} parent=31 // pred_check
          %p264 = pneg %p176
        $region38: #{tpu_custom_call.1} parent=31 // pred_check_branch
          %266 = sbr.rel (%p264) target = $region40
        $region39: #{tpu_custom_call.1} parent=31 // pred_region
          %s267 = sand.u32 %s166, 1
          %s268 = scalar_lea.sflag [#allocation6], %s267
          %s269 = sand.u32 %s166, 1
          %s270 = smul.addr %s269, 256
          %s271 = scalar_lea.vmem [#allocation5], %s270
          %s272 = smul.u32 2, %s30
          %s273 = smul.u32 2, %s29
          %s275 = ssub.s32 4096, 4096
          %276 = vsyncadd %s268, %s275
          %s277 = smul.addr %s272, 2
          %s278 = sadd.s32 %s273, %s277
          %s279 = smul.addr %s28, 32
          %s280 = sadd.s32 %s278, %s279
          %s281 = smul.addr %s280, 128
          %s282 = scalar_lea.hbm %s5, %s281
          %s283 = sshll.u32 %s271, 4
          %s284 = int_to_ptr.vmem [resolvable:$true] %s283
          %289 = dma.hbm_to_vmem [thread:$0]  %s282, 4096, %s284, %s268, 256, 256, 16
        $region40: #{tpu_custom_call.1} parent=31 // pred_fallthru
          _
      $region32: #{tpu_custom_call.1} parent=5 // pred_fallthru
        _
      %p290 = scmp.le.s32.totalorder 1, %s21
      %p291 = scmp.lt.s32.totalorder %s21, 3
      %p292 = pnand %p290, %p291
      %p293 = pneg %p292
      // Predicated region
      $region41: #{tpu_custom_call.1} parent=5 // pred_check
        _
      $region42: #{tpu_custom_call.1} parent=5 // pred_check_branch
        %295 = sbr.rel (%p292) target = $region44
      $region43: #{tpu_custom_call.1} parent=5 // pred_region
        %s296 = ssub.s32 %s21, 1
        %s297 = sand.u32 %s55, 1
        %s298 = scalar_lea.sflag [#allocation3], %s297
        %s299 = sand.u32 %s55, 1
        %s300 = smul.addr %s299, 16
        %s301 = scalar_lea.vmem [#allocation2], %s300
        // Predicated region
        $region45: #{tpu_custom_call.1} parent=43 // pred_check
          %p302 = pneg %p68
        $region46: #{tpu_custom_call.1} parent=43 // pred_check_branch
          %304 = sbr.rel (%p302) target = $region48
        $region47: #{tpu_custom_call.1} parent=43 // pred_region
          %305 = dma.done %s298, 256
        $region48: #{tpu_custom_call.1} parent=43 // pred_fallthru
          _
        %s306 = sand.u32 %s169, 1
        %s307 = scalar_lea.sflag [#allocation6], %s306
        %s308 = sand.u32 %s169, 1
        %s309 = smul.addr %s308, 256
        %s310 = scalar_lea.vmem [#allocation5], %s309
        // Predicated region
        $region49: #{tpu_custom_call.1} parent=43 // pred_check
          %p311 = pneg %p182
        $region50: #{tpu_custom_call.1} parent=43 // pred_check_branch
          %313 = sbr.rel (%p311) target = $region52
        $region51: #{tpu_custom_call.1} parent=43 // pred_region
          %314 = dma.done %s307, 4096
        $region52: #{tpu_custom_call.1} parent=43 // pred_fallthru
          _
        %s315 = sand.u32 %s55, 1
        %s316 = scalar_lea.sflag [#allocation3], %s315
        %s317 = sand.u32 %s55, 1
        %s318 = smul.addr %s317, 16
        %s319 = scalar_lea.vmem [#allocation2], %s318
        %p320 = pneg %p68
        %p321 = pneg %p65
        %p322 = pneg %p89
        %p323 = pneg %p86
        %p324 = pneg %p110
        %p325 = pneg %p107
        %p326 = pneg %p131
        %p327 = pneg %p128
        %p328 = pneg %p152
        %p329 = pneg %p149
        %s330 = sand.u32 %s169, 1
        %s331 = scalar_lea.sflag [#allocation6], %s330
        %s332 = sand.u32 %s169, 1
        %s333 = smul.addr %s332, 256
        %s334 = scalar_lea.vmem [#allocation5], %s333
        %p335 = pneg %p182
        %p336 = pneg %p179
        %p337 = pneg %p212
        %p338 = pneg %p209
        %s339 = sand.u32 %s199, 1
        %s340 = scalar_lea.sflag [#allocation4], %s339
        %s341 = sand.u32 %s199, 1
        %s342 = smul.addr %s341, 256
        %s343 = scalar_lea.vmem [#allocation7], %s342
        %s344 = smul.u32 2, %s32
        %s345 = smul.u32 2, %s33
        %s346 = smul.u32 2, %s32
        %s347 = smul.u32 2, %s33
        %s348 = smul.u32 2, %s32
        %v349 = vld [vmem:[%s301] sm:$0xff]
        %v350 = vld [vmem:[%s301 + $0x8] sm:$0xff]
        %v351 = vld [vmem:[%s1] sm:$0xf]
        %v352 = vld [vmem:[%s2] sm:$0xf]
        %354 = vset.pattern.permute.xlu0 0
        %355 = vperm.xlu0 %354, %v352
        %v356 = vpop.permute.xlu0 %355
        %vm358 = vcmask 64512
        %v360 = vsel %vm358, %v351, 0
        %362 = vmatprep.subr.mxu0 %v350
        %363 = vmatpush1.msra.mxu0 %v349
        %364 = vmatprep.subr.mxu0 0.0
        %365 = vmatpush1.msra.mxu0 0.0
        %366 = vmatprep.subr.mxu0 0.0
        %367 = vmatpush1.msra.mxu0 0.0
        %368 = vmatprep.subr.mxu0 0.0
        %369 = vmatpush1.msra.mxu0 0.0
        %370 = vmatprep.subr.mxu0 0.0
        %371 = vmatpush1.msra.mxu0 0.0
        %372 = vmatprep.subr.mxu0 0.0
        %373 = vmatpush1.msra.mxu0 0.0
        %374 = vmatprep.subr.mxu0 0.0
        %375 = vmatpush1.msra.mxu0 0.0
        %376 = vmatprep.subr.mxu0 0.0
        %377 = vmatpush1.msra.mxu0 0.0
        %378 = vmatprep.subr.mxu0 0.0
        %379 = vmatpush1.msra.mxu0 0.0
        %380 = vmatprep.subr.mxu0 0.0
        %381 = vmatpush1.msra.mxu0 0.0
        %382 = vmatprep.subr.mxu0 0.0
        %383 = vmatpush1.msra.mxu0 0.0
        %384 = vmatprep.subr.mxu0 0.0
        %385 = vmatpush1.msra.mxu0 0.0
        %386 = vmatprep.subr.mxu0 0.0
        %387 = vmatpush1.msra.mxu0 0.0
        %388 = vmatprep.subr.mxu0 0.0
        %389 = vmatpush1.msra.mxu0 0.0
        %390 = vmatprep.subr.mxu0 0.0
        %391 = vmatpush1.msra.mxu0 0.0
        %392 = vmatprep.subr.mxu0 0.0
        %393 = vmatpush1.msra.mxu0 0.0
        %394 = vmatprep.subr.mxu0 0.0
        %395 = vmatpush1.msra.mxu0 0.0
        %396 = vmatprep.subr.mxu0 0.0
        %397 = vmatpush1.msra.mxu0 0.0
        %398 = vmatprep.subr.mxu0 0.0
        %399 = vmatpush1.msra.mxu0 0.0
        %400 = vmatprep.subr.mxu0 0.0
        %401 = vmatpush1.msra.mxu0 0.0
        %402 = vmatprep.subr.mxu0 0.0
        %403 = vmatpush1.msra.mxu0 0.0
        %404 = vmatprep.subr.mxu0 0.0
        %405 = vmatpush1.msra.mxu0 0.0
        %406 = vmatprep.subr.mxu0 0.0
        %407 = vmatpush1.msra.mxu0 0.0
        %408 = vmatprep.subr.mxu0 0.0
        %409 = vmatpush1.msra.mxu0 0.0
        %410 = vmatprep.subr.mxu0 0.0
        %411 = vmatpush1.msra.mxu0 0.0
        %412 = vmatprep.subr.mxu0 0.0
        %413 = vmatpush1.msra.mxu0 0.0
        %414 = vmatprep.subr.mxu0 0.0
        %415 = vmatpush1.msra.mxu0 0.0
        %416 = vmatprep.subr.mxu0 0.0
        %417 = vmatpush1.msra.mxu0 0.0
        %418 = vmatprep.subr.mxu0 0.0
        %419 = vmatpush1.msra.mxu0 0.0
        %420 = vmatprep.subr.mxu0 0.0
        %421 = vmatpush1.msra.mxu0 0.0
        %422 = vmatprep.subr.mxu0 0.0
        %423 = vmatpush1.msra.mxu0 0.0
        %424 = vmatprep.subr.mxu0 0.0
        %425 = vmatpush1.msra.mxu0 0.0
        %426 = vmatprep.mubr.f32.mxu0 0.0
        %427 = vmatmul.mubr.f32.gmra.mrb[0].mxu0 %v360
        %v428 = vpop.f32.mrb[0].mxu0
        %v429 = vadd.f32 %v356, %v428
        %v430 = vpop.f32.mrb[0].mxu0
        %v431 = vadd.f32 %v356, %v430
        %432 = vdwg.mxu0
        %vm433 = vcmp.gt.f32.partialorder %v429, 0.0
        %vm434 = vcmp.gt.f32.partialorder %v431, 0.0
        %v435 = vmul.f32 %v429, 0.01
        %v436 = vmul.f32 %v431, 0.01
        %v437 = vsel %vm433, %v429, %v435
        %v438 = vsel %vm434, %v431, %v436
        %v439 = vld [vmem:[%s3] sm:$0xff]
        %v440 = vld [vmem:[%s4] sm:$0xff]
        %442 = vset.pattern.permute.xlu0 0
        %443 = vperm.xlu0 %442, %v440
        %v444 = vpop.permute.xlu0 %443
        %vm446 = vcmask 31744
        %v448 = vsel %vm446, %v439, 0
        %vm450 = vcmask 1043456
        %v452 = vsel %vm450, %v437, 0
        %v455 = vsel %vm450, %v438, 0
        %457 = vmatprep.subr.mxu0 %v455
        %458 = vmatpush1.msra.mxu0 %v452
        %459 = vmatprep.subr.mxu0 0.0
        %460 = vmatpush1.msra.mxu0 0.0
        %461 = vmatprep.subr.mxu0 0.0
        %462 = vmatpush1.msra.mxu0 0.0
        %463 = vmatprep.subr.mxu0 0.0
        %464 = vmatpush1.msra.mxu0 0.0
        %465 = vmatprep.subr.mxu0 0.0
        %466 = vmatpush1.msra.mxu0 0.0
        %467 = vmatprep.subr.mxu0 0.0
        %468 = vmatpush1.msra.mxu0 0.0
        %469 = vmatprep.subr.mxu0 0.0
        %470 = vmatpush1.msra.mxu0 0.0
        %471 = vmatprep.subr.mxu0 0.0
        %472 = vmatpush1.msra.mxu0 0.0
        %473 = vmatprep.subr.mxu0 0.0
        %474 = vmatpush1.msra.mxu0 0.0
        %475 = vmatprep.subr.mxu0 0.0
        %476 = vmatpush1.msra.mxu0 0.0
        %477 = vmatprep.subr.mxu0 0.0
        %478 = vmatpush1.msra.mxu0 0.0
        %479 = vmatprep.subr.mxu0 0.0
        %480 = vmatpush1.msra.mxu0 0.0
        %481 = vmatprep.subr.mxu0 0.0
        %482 = vmatpush1.msra.mxu0 0.0
        %483 = vmatprep.subr.mxu0 0.0
        %484 = vmatpush1.msra.mxu0 0.0
        %485 = vmatprep.subr.mxu0 0.0
        %486 = vmatpush1.msra.mxu0 0.0
        %487 = vmatprep.subr.mxu0 0.0
        %488 = vmatpush1.msra.mxu0 0.0
        %489 = vmatprep.subr.mxu0 0.0
        %490 = vmatpush1.msra.mxu0 0.0
        %491 = vmatprep.subr.mxu0 0.0
        %492 = vmatpush1.msra.mxu0 0.0
        %493 = vmatprep.subr.mxu0 0.0
        %494 = vmatpush1.msra.mxu0 0.0
        %495 = vmatprep.subr.mxu0 0.0
        %496 = vmatpush1.msra.mxu0 0.0
        %497 = vmatprep.subr.mxu0 0.0
        %498 = vmatpush1.msra.mxu0 0.0
        %499 = vmatprep.subr.mxu0 0.0
        %500 = vmatpush1.msra.mxu0 0.0
        %501 = vmatprep.subr.mxu0 0.0
        %502 = vmatpush1.msra.mxu0 0.0
        %503 = vmatprep.subr.mxu0 0.0
        %504 = vmatpush1.msra.mxu0 0.0
        %505 = vmatprep.subr.mxu0 0.0
        %506 = vmatpush1.msra.mxu0 0.0
        %507 = vmatprep.subr.mxu0 0.0
        %508 = vmatpush1.msra.mxu0 0.0
        %509 = vmatprep.subr.mxu0 0.0
        %510 = vmatpush1.msra.mxu0 0.0
        %511 = vmatprep.subr.mxu0 0.0
        %512 = vmatpush1.msra.mxu0 0.0
        %513 = vmatprep.subr.mxu0 0.0
        %514 = vmatpush1.msra.mxu0 0.0
        %515 = vmatprep.subr.mxu0 0.0
        %516 = vmatpush1.msra.mxu0 0.0
        %517 = vmatprep.subr.mxu0 0.0
        %518 = vmatpush1.msra.mxu0 0.0
        %519 = vmatprep.subr.mxu0 0.0
        %520 = vmatpush1.msra.mxu0 0.0
        %521 = vmatprep.mubr.f32.mxu0 0.0
        %522 = vmatmul.mubr.f32.gmra.mrb[0].mxu0 %v448
        %v523 = vpop.f32.mrb[0].mxu0
        %v524 = vadd.f32 %v444, %v523
        %v525 = vpop.f32.mrb[0].mxu0
        %v526 = vadd.f32 %v444, %v525
        %527 = vdwg.mxu0
        %v528 = vxor.u32 %v524, 2147483648
        %v529 = vxor.u32 %v526, 2147483648
        %v530 = vmul.f32 %v528, 1.442695
        %v531 = vpow.pop %v530
        %v532 = vmul.f32 %v529, 1.442695
        %v533 = vpow.pop %v532
        %v534 = vadd.f32 %v531, 1.0
        %v535 = vadd.f32 %v533, 1.0
        %v536 = vrcp.pop %v534
        %v537 = vmul.f32 1.0, %v536
        %v538 = vrcp.pop %v535
        %v539 = vmul.f32 1.0, %v538
        %v542 = vcombine.low %v537, %v539
        %v543 = vcombine.high %v537, %v539
        %v545 = vunpack.c.l.s4 1966171168
        %v546 = vunpack.c.0.s8 %v545
        %v547 = vlaneseq
        %v548 = vshrl.u32 %v547, 7
        %v549 = vsub.s32 %v546, %v548
        %v550 = vrot.slane %v542, %v549
        %v552 = vunpack.c.l.s4 1966171168
        %v553 = vunpack.c.0.s8 %v552
        %v554 = vlaneseq
        %v555 = vshrl.u32 %v554, 7
        %v556 = vsub.s32 %v553, %v555
        %v557 = vrot.slane %v543, %v556
        %v558 = vcombine.high %v550, %v550
        %v559 = vcombine.high %v557, %v557
        %v561 = vunpack.c.l.s4 1966171168
        %v562 = vunpack.c.0.s8 %v561
        %v563 = vlaneseq
        %v564 = vshrl.u32 %v563, 7
        %v565 = vsub.s32 %v562, %v564
        %v566 = vrot.slane %v550, %v565
        %v568 = vunpack.c.l.s4 1966171168
        %v569 = vunpack.c.0.s8 %v568
        %v570 = vlaneseq
        %v571 = vshrl.u32 %v570, 7
        %v572 = vsub.s32 %v569, %v571
        %v573 = vrot.slane %v557, %v572
        %v575 = vunpack.c.l.s4 1966171168
        %v576 = vunpack.c.0.s8 %v575
        %v577 = vlaneseq
        %v578 = vshrl.u32 %v577, 7
        %v579 = vsub.s32 %v576, %v578
        %v580 = vrot.slane %v558, %v579
        %v582 = vunpack.c.l.s4 1966171168
        %v583 = vunpack.c.0.s8 %v582
        %v584 = vlaneseq
        %v585 = vshrl.u32 %v584, 7
        %v586 = vsub.s32 %v583, %v585
        %v587 = vrot.slane %v559, %v586
        %v588 = vcombine.high %v566, %v566
        %v589 = vcombine.high %v573, %v573
        %v590 = vcombine.high %v580, %v580
        %v591 = vcombine.high %v587, %v587
        %v592 = vld [vmem:[%s310] sm:$0xff]
        %v593 = vld [vmem:[%s310 + $0x8] sm:$0xff]
        %v594 = vld [vmem:[%s310 + $0x10] sm:$0xff]
        %v595 = vld [vmem:[%s310 + $0x18] sm:$0xff]
        %v596 = vld [vmem:[%s310 + $0x20] sm:$0xff]
        %v597 = vld [vmem:[%s310 + $0x28] sm:$0xff]
        %v598 = vld [vmem:[%s310 + $0x30] sm:$0xff]
        %v599 = vld [vmem:[%s310 + $0x38] sm:$0xff]
        %v600 = vld [vmem:[%s310 + $0x40] sm:$0xff]
        %v601 = vld [vmem:[%s310 + $0x48] sm:$0xff]
        %v602 = vld [vmem:[%s310 + $0x50] sm:$0xff]
        %v603 = vld [vmem:[%s310 + $0x58] sm:$0xff]
        %v604 = vld [vmem:[%s310 + $0x60] sm:$0xff]
        %v605 = vld [vmem:[%s310 + $0x68] sm:$0xff]
        %v606 = vld [vmem:[%s310 + $0x70] sm:$0xff]
        %v607 = vld [vmem:[%s310 + $0x78] sm:$0xff]
        %v608 = vld [vmem:[%s310 + $0x80] sm:$0xff]
        %v609 = vld [vmem:[%s310 + $0x88] sm:$0xff]
        %v610 = vld [vmem:[%s310 + $0x90] sm:$0xff]
        %v611 = vld [vmem:[%s310 + $0x98] sm:$0xff]
        %v612 = vld [vmem:[%s310 + $0xa0] sm:$0xff]
        %v613 = vld [vmem:[%s310 + $0xa8] sm:$0xff]
        %v614 = vld [vmem:[%s310 + $0xb0] sm:$0xff]
        %v615 = vld [vmem:[%s310 + $0xb8] sm:$0xff]
        %v616 = vld [vmem:[%s310 + $0xc0] sm:$0xff]
        %v617 = vld [vmem:[%s310 + $0xc8] sm:$0xff]
        %v618 = vld [vmem:[%s310 + $0xd0] sm:$0xff]
        %v619 = vld [vmem:[%s310 + $0xd8] sm:$0xff]
        %v620 = vld [vmem:[%s310 + $0xe0] sm:$0xff]
        %v621 = vld [vmem:[%s310 + $0xe8] sm:$0xff]
        %v622 = vld [vmem:[%s310 + $0xf0] sm:$0xff]
        %v623 = vld [vmem:[%s310 + $0xf8] sm:$0xff]
        %v624 = vlaneseq
        %v625 = vshrl.u32 %v624, 7
        %v626 = vsub.s32 0, %v625
        %v627 = vrot.slane %v566, %v626
        %v628 = vlaneseq
        %v629 = vshrl.u32 %v628, 7
        %v630 = vsub.s32 1, %v629
        %v631 = vrot.slane %v566, %v630
        %v632 = vlaneseq
        %v633 = vshrl.u32 %v632, 7
        %v634 = vsub.s32 0, %v633
        %v635 = vrot.slane %v580, %v634
        %v636 = vlaneseq
        %v637 = vshrl.u32 %v636, 7
        %v638 = vsub.s32 1, %v637
        %v639 = vrot.slane %v580, %v638
        %v640 = vlaneseq
        %v641 = vshrl.u32 %v640, 7
        %v642 = vsub.s32 0, %v641
        %v643 = vrot.slane %v588, %v642
        %v644 = vlaneseq
        %v645 = vshrl.u32 %v644, 7
        %v646 = vsub.s32 1, %v645
        %v647 = vrot.slane %v588, %v646
        %v648 = vlaneseq
        %v649 = vshrl.u32 %v648, 7
        %v650 = vsub.s32 0, %v649
        %v651 = vrot.slane %v590, %v650
        %v652 = vlaneseq
        %v653 = vshrl.u32 %v652, 7
        %v654 = vsub.s32 1, %v653
        %v655 = vrot.slane %v590, %v654
        %v656 = vlaneseq
        %v657 = vshrl.u32 %v656, 7
        %v658 = vsub.s32 0, %v657
        %v659 = vrot.slane %v573, %v658
        %v660 = vlaneseq
        %v661 = vshrl.u32 %v660, 7
        %v662 = vsub.s32 1, %v661
        %v663 = vrot.slane %v573, %v662
        %v664 = vlaneseq
        %v665 = vshrl.u32 %v664, 7
        %v666 = vsub.s32 0, %v665
        %v667 = vrot.slane %v587, %v666
        %v668 = vlaneseq
        %v669 = vshrl.u32 %v668, 7
        %v670 = vsub.s32 1, %v669
        %v671 = vrot.slane %v587, %v670
        %v672 = vlaneseq
        %v673 = vshrl.u32 %v672, 7
        %v674 = vsub.s32 0, %v673
        %v675 = vrot.slane %v589, %v674
        %v676 = vlaneseq
        %v677 = vshrl.u32 %v676, 7
        %v678 = vsub.s32 1, %v677
        %v679 = vrot.slane %v589, %v678
        %v680 = vlaneseq
        %v681 = vshrl.u32 %v680, 7
        %v682 = vsub.s32 0, %v681
        %v683 = vrot.slane %v591, %v682
        %v684 = vlaneseq
        %v685 = vshrl.u32 %v684, 7
        %v686 = vsub.s32 1, %v685
        %v687 = vrot.slane %v591, %v686
        %v704 = vmul.f32 %v627, %v592
        %v705 = vmul.f32 %v631, %v593
        %v706 = vmul.f32 %v627, %v594
        %v707 = vmul.f32 %v631, %v595
        %v708 = vmul.f32 %v635, %v596
        %v709 = vmul.f32 %v639, %v597
        %v710 = vmul.f32 %v635, %v598
        %v711 = vmul.f32 %v639, %v599
        %v712 = vmul.f32 %v643, %v600
        %v713 = vmul.f32 %v647, %v601
        %v714 = vmul.f32 %v643, %v602
        %v715 = vmul.f32 %v647, %v603
        %v716 = vmul.f32 %v651, %v604
        %v717 = vmul.f32 %v655, %v605
        %v718 = vmul.f32 %v651, %v606
        %v719 = vmul.f32 %v655, %v607
        %v720 = vmul.f32 %v659, %v608
        %v721 = vmul.f32 %v663, %v609
        %v722 = vmul.f32 %v659, %v610
        %v723 = vmul.f32 %v663, %v611
        %v724 = vmul.f32 %v667, %v612
        %v725 = vmul.f32 %v671, %v613
        %v726 = vmul.f32 %v667, %v614
        %v727 = vmul.f32 %v671, %v615
        %v728 = vmul.f32 %v675, %v616
        %v729 = vmul.f32 %v679, %v617
        %v730 = vmul.f32 %v675, %v618
        %v731 = vmul.f32 %v679, %v619
        %v732 = vmul.f32 %v683, %v620
        %v733 = vmul.f32 %v687, %v621
        %v734 = vmul.f32 %v683, %v622
        %v735 = vmul.f32 %v687, %v623
        %736 = vst [vmem:[%s343] sm:$0xff] %v704
        %737 = vst [vmem:[%s343 + $0x8] sm:$0xff] %v705
        %738 = vst [vmem:[%s343 + $0x10] sm:$0xff] %v706
        %739 = vst [vmem:[%s343 + $0x18] sm:$0xff] %v707
        %740 = vst [vmem:[%s343 + $0x20] sm:$0xff] %v708
        %741 = vst [vmem:[%s343 + $0x28] sm:$0xff] %v709
        %742 = vst [vmem:[%s343 + $0x30] sm:$0xff] %v710
        %743 = vst [vmem:[%s343 + $0x38] sm:$0xff] %v711
        %744 = vst [vmem:[%s343 + $0x40] sm:$0xff] %v712
        %745 = vst [vmem:[%s343 + $0x48] sm:$0xff] %v713
        %746 = vst [vmem:[%s343 + $0x50] sm:$0xff] %v714
        %747 = vst [vmem:[%s343 + $0x58] sm:$0xff] %v715
        %748 = vst [vmem:[%s343 + $0x60] sm:$0xff] %v716
        %749 = vst [vmem:[%s343 + $0x68] sm:$0xff] %v717
        %750 = vst [vmem:[%s343 + $0x70] sm:$0xff] %v718
        %751 = vst [vmem:[%s343 + $0x78] sm:$0xff] %v719
        %752 = vst [vmem:[%s343 + $0x80] sm:$0xff] %v720
        %753 = vst [vmem:[%s343 + $0x88] sm:$0xff] %v721
        %754 = vst [vmem:[%s343 + $0x90] sm:$0xff] %v722
        %755 = vst [vmem:[%s343 + $0x98] sm:$0xff] %v723
        %756 = vst [vmem:[%s343 + $0xa0] sm:$0xff] %v724
        %757 = vst [vmem:[%s343 + $0xa8] sm:$0xff] %v725
        %758 = vst [vmem:[%s343 + $0xb0] sm:$0xff] %v726
        %759 = vst [vmem:[%s343 + $0xb8] sm:$0xff] %v727
        %760 = vst [vmem:[%s343 + $0xc0] sm:$0xff] %v728
        %761 = vst [vmem:[%s343 + $0xc8] sm:$0xff] %v729
        %762 = vst [vmem:[%s343 + $0xd0] sm:$0xff] %v730
        %763 = vst [vmem:[%s343 + $0xd8] sm:$0xff] %v731
        %764 = vst [vmem:[%s343 + $0xe0] sm:$0xff] %v732
        %765 = vst [vmem:[%s343 + $0xe8] sm:$0xff] %v733
        %766 = vst [vmem:[%s343 + $0xf0] sm:$0xff] %v734
        %767 = vst [vmem:[%s343 + $0xf8] sm:$0xff] %v735
        %s768 = sand.u32 %s199, 1
        %s769 = scalar_lea.sflag [#allocation4], %s768
        %s770 = sand.u32 %s199, 1
        %s771 = smul.addr %s770, 256
        %s772 = scalar_lea.vmem [#allocation7], %s771
        // Predicated region
        $region53: #{tpu_custom_call.1} parent=43 // pred_check
          %p773 = pneg %p209
        $region54: #{tpu_custom_call.1} parent=43 // pred_check_branch
          %775 = sbr.rel (%p773) target = $region56
        $region55: #{tpu_custom_call.1} parent=43 // pred_region
          %s776 = smul.u32 2, %s33
          %s777 = smul.u32 2, %s32
          %s779 = ssub.s32 4096, 4096
          %780 = vsyncadd %s769, %s779
          %s781 = smul.addr %s776, 2
          %s782 = sadd.s32 %s777, %s781
          %s783 = smul.addr %s31, 32
          %s784 = sadd.s32 %s782, %s783
          %s785 = smul.addr %s784, 128
          %s786 = scalar_lea.hbm %s6, %s785
          %s787 = sshll.u32 %s772, 4
          %s788 = int_to_ptr.vmem [resolvable:$true] %s787
          %793 = dma.vmem_to_hbm [thread:$0]  %s788, 4096, %s786, %s769, 256, 256, 16
        $region56: #{tpu_custom_call.1} parent=43 // pred_fallthru
          _
      $region44: #{tpu_custom_call.1} parent=5 // pred_fallthru
        _
      %p794 = scmp.le.s32.totalorder 2, %s21
      // Predicated region
      $region57: #{tpu_custom_call.1} parent=5 // pred_check
        %p795 = pneg %p794
      $region58: #{tpu_custom_call.1} parent=5 // pred_check_branch
        %797 = sbr.rel (%p795) target = $region60
      $region59: #{tpu_custom_call.1} parent=5 // pred_region
        %s798 = ssub.s32 %s21, 2
        // Predicated region
        $region61: #{tpu_custom_call.1} parent=59 // pred_check
          %p799 = pneg %p215
        $region62: #{tpu_custom_call.1} parent=59 // pred_check_branch
          %801 = sbr.rel (%p799) target = $region64
        $region63: #{tpu_custom_call.1} parent=59 // pred_region
          %s802 = sand.u32 %s200, 1
          %s803 = scalar_lea.sflag [#allocation4], %s802
          %s804 = sand.u32 %s200, 1
          %s805 = smul.addr %s804, 256
          %s806 = scalar_lea.vmem [#allocation7], %s805
          %807 = dma.done %s803, 4096
        $region64: #{tpu_custom_call.1} parent=59 // pred_fallthru
          _
      $region60: #{tpu_custom_call.1} parent=5 // pred_fallthru
        _
    $region6: #{tpu_custom_call.1} parent=1 // loop_footer
      %s25 = sadd.s32 1, %s21
    $region7: #{tpu_custom_call.1} parent=1 // loop_footer_branch
      %20 = sbr.rel target = $region3
    $region8: #{tpu_custom_call.1} parent=1 // loop_exit
      _
    %808 = vsyncpa [#allocation3], 1
    %s809 = scalar_lea.sflag [#allocation3], 1
    %810 = vsyncpa %s809, 1
    %811 = vsyncpa [#allocation6], 1
    %s812 = scalar_lea.sflag [#allocation6], 1
    %813 = vsyncpa %s812, 1
    %814 = vsyncpa [#allocation4], 1
    %s815 = scalar_lea.sflag [#allocation4], 1
    %816 = vsyncpa %s815, 1

</llo_original>
